<compile_context>
chip_gen: v5e
topology: v5e:2x2
jax: 0.10.0
libtpu: 0.0.40
codegen_flags: <defaults>
</compile_context>

<pallas_src>
import math

import jax
import jax.numpy as jnp
from jax.experimental import pallas as pl
from jax.experimental.pallas import tpu as pltpu


def actor_continuous_kernel(
    states_ref,   # [BT, OBS]   f32  (batch tile)
    w1_ref,       # [OBS, H]    f32
    b1_ref,       # [1, H]      f32
    w2_ref,       # [H, H]      f32
    b2_ref,       # [1, H]      f32
    w3_ref,       # [H, ACT]    f32
    b3_ref,       # [1, ACT]    f32
    log_std_ref,  # [1, ACT]    f32
    eps_ref,      # [BT, ACT]   f32  (standard-normal noise)
    mu_ref,       # out: [BT, ACT] f32
    act_ref,      # out: [BT, ACT] f32  sampled actions
    lp_ref,       # out: [BT, 1]   f32  log_prob(actions).sum(-1)
):
    x = states_ref[...]

    # actor_net: Linear -> Tanh -> Linear -> Tanh -> Linear   (MXU + VPU/EUP)
    h1 = jnp.tanh(
        jnp.dot(x, w1_ref[...], preferred_element_type=jnp.float32) + b1_ref[...]
    )
    h2 = jnp.tanh(
        jnp.dot(h1, w2_ref[...], preferred_element_type=jnp.float32) + b2_ref[...]
    )
    mu = jnp.dot(h2, w3_ref[...], preferred_element_type=jnp.float32) + b3_ref[...]

    log_std = log_std_ref[...]          # [1, ACT]
    std = jnp.exp(log_std)              # [1, ACT] (EUP)
    eps = eps_ref[...]                  # [BT, ACT]

    mu_ref[...] = mu
    act_ref[...] = mu + std * eps       # reparameterized pi.sample()

    # Fused get_log_prob(pi, actions) for the sampled actions:
    #   z = (actions - mu) / std == eps  exactly, so
    #   lp = -0.5*sum(eps^2) - (sum(log_std) + 0.5*ACT*log(2*pi))
    act_dim = log_std.shape[-1]
    log_norm = (
        jnp.sum(log_std, axis=-1, keepdims=True)            # [1, 1]
        + 0.5 * act_dim * math.log(2.0 * math.pi)
    )
    lp_ref[...] = -0.5 * jnp.sum(eps * eps, axis=-1, keepdims=True) - log_norm


def actor_continuous_forward(states, params, eps, *, b_tile=256):
    """Fused ActorContinuous forward.

    Returns (mu [B, ACT], std [1, ACT], actions [B, ACT], log_prob [B]).
    (mu, std) fully determine the distribution `pi`; log_prob is
    get_log_prob(pi, actions) for the sampled actions.
    """
    B, obs_dim = states.shape
    hidden = params["w1"].shape[-1]
    act_dim = params["w3"].shape[-1]

    # Choose the batch tile and pad B up to a tile multiple (padded rows are
    # computed on zeros -- finite everywhere -- and sliced off afterwards).
    if B <= b_tile:
        b_tile = max(8, ((B + 7) // 8) * 8)
    n_blocks = pl.cdiv(B, b_tile)
    b_pad = n_blocks * b_tile
    if b_pad != B:
        states = jnp.pad(states, ((0, b_pad - B), (0, 0)))
        eps = jnp.pad(eps, ((0, b_pad - B), (0, 0)))

    def resident(shape):  # weights/biases: same block every grid step -> stays in VMEM
        return pl.BlockSpec(shape, lambda i: (0, 0))

    out_shape = (
        jax.ShapeDtypeStruct((b_pad, act_dim), jnp.float32),  # mu
        jax.ShapeDtypeStruct((b_pad, act_dim), jnp.float32),  # actions
        jax.ShapeDtypeStruct((b_pad, 1), jnp.float32),        # log_prob
    )
    fn = pl.pallas_call(
        actor_continuous_kernel,
        out_shape=out_shape,
        grid=(n_blocks,),
        in_specs=[
            pl.BlockSpec((b_tile, obs_dim), lambda i: (i, 0)),   # states
            resident((obs_dim, hidden)),                         # w1
            resident((1, hidden)),                               # b1
            resident((hidden, hidden)),                          # w2
            resident((1, hidden)),                               # b2
            resident((hidden, act_dim)),                         # w3
            resident((1, act_dim)),                              # b3
            resident((1, act_dim)),                              # log_std
            pl.BlockSpec((b_tile, act_dim), lambda i: (i, 0)),   # eps
        ],
        out_specs=(
            pl.BlockSpec((b_tile, act_dim), lambda i: (i, 0)),   # mu
            pl.BlockSpec((b_tile, act_dim), lambda i: (i, 0)),   # actions
            pl.BlockSpec((b_tile, 1), lambda i: (i, 0)),         # log_prob
        ),
        compiler_params=pltpu.CompilerParams(
            dimension_semantics=("parallel",)  # shard batch tiles across TCs (v7x)
        ),
    )
    mu, actions, lp = fn(
        states,
        params["w1"], params["b1"],
        params["w2"], params["b2"],
        params["w3"], params["b3"],
        params["log_std"],
        eps,
    )
    std = jnp.exp(params["log_std"])   # [1, ACT]: batch-invariant scale of pi
    return mu[:B], std, actions[:B], lp[:B, 0]


def actor_continuous_log_prob(mu, std, actions):
    """get_log_prob(pi, actions) for arbitrary actions (pure JAX helper).
    The hot path -- log_prob of the freshly sampled actions -- is already
    produced fused inside actor_continuous_forward."""
    z = (actions - mu) / std
    return jnp.sum(
        -0.5 * z * z - jnp.log(std) - 0.5 * math.log(2.0 * math.pi), axis=-1
    )


def init_params(key, obs_dim, hidden, act_dim):
    """Deterministic init matching torch.nn.Linear defaults
    (uniform(-1/sqrt(fan_in), 1/sqrt(fan_in))), weights stored as [in, out]."""
    ks = jax.random.split(key, 6)

    def lin(kw, kb, fan_in, fan_out):
        bound = 1.0 / math.sqrt(fan_in)
        w = jax.random.uniform(kw, (fan_in, fan_out), jnp.float32, -bound, bound)
        b = jax.random.uniform(kb, (1, fan_out), jnp.float32, -bound, bound)
        return w, b

    w1, b1 = lin(ks[0], ks[1], obs_dim, hidden)
    w2, b2 = lin(ks[2], ks[3], hidden, hidden)
    w3, b3 = lin(ks[4], ks[5], hidden, act_dim)
    log_std = -0.5 * jnp.ones((1, act_dim), jnp.float32)  # as in __init__
    return dict(w1=w1, b1=b1, w2=w2, b2=b2, w3=w3, b3=b3, log_std=log_std)


if __name__ == "__main__":
    B, OBS, H, ACT = 4, 32, 64, 8

    key = jax.random.PRNGKey(0)
    k_params, k_states, k_eps, k_states2, k_eps2 = jax.random.split(key, 5)

    params = init_params(k_params, OBS, H, ACT)
    states = jax.random.normal(k_states, (B, OBS), jnp.float32)
    eps = jax.random.normal(k_eps, (B, ACT), jnp.float32)  # reparameterized noise

    mu, std, actions, lp = actor_continuous_forward(states, params, eps)
    jax.block_until_ready((mu, std, actions, lp))

    # Pure-JAX reference.
    def reference(s, p, e):
        h1 = jnp.tanh(s @ p["w1"] + p["b1"])
        h2 = jnp.tanh(h1 @ p["w2"] + p["b2"])
        mu_r = h2 @ p["w3"] + p["b3"]
        std_r = jnp.exp(p["log_std"])
        act_r = mu_r + std_r * e
        lp_r = jnp.sum(
            -0.5 * ((act_r - mu_r) / std_r) ** 2
            - p["log_std"]
            - 0.5 * math.log(2.0 * math.pi),
            axis=-1,
        )
        return mu_r, std_r, act_r, lp_r

    mu_r, std_r, act_r, lp_r = reference(states, params, eps)
    assert jnp.allclose(mu, mu_r, atol=1e-5), "mu mismatch"
    assert jnp.allclose(std, std_r, atol=1e-6), "std mismatch"
    assert jnp.allclose(actions, act_r, atol=1e-5), "actions mismatch"
    assert jnp.allclose(lp, lp_r, atol=1e-4), "fused log_prob mismatch"
    assert jnp.allclose(actor_continuous_log_prob(mu, std, actions), lp, atol=1e-4)

    # Exercise the multi-step grid + tail-padding path (B not a tile multiple).
    B2 = 300
    states2 = jax.random.normal(k_states2, (B2, OBS), jnp.float32)
    eps2 = jax.random.normal(k_eps2, (B2, ACT), jnp.float32)
    mu2, std2, actions2, lp2 = actor_continuous_forward(
        states2, params, eps2, b_tile=128
    )
    jax.block_until_ready((mu2, actions2, lp2))
    mu2_r, _, act2_r, lp2_r = reference(states2, params, eps2)
    assert jnp.allclose(mu2, mu2_r, atol=1e-5), "mu mismatch (gridded)"
    assert jnp.allclose(actions2, act2_r, atol=1e-5), "actions mismatch (gridded)"
    assert jnp.allclose(lp2, lp2_r, atol=1e-4), "log_prob mismatch (gridded)"

    print("KERNEL_OK")
</pallas_src>

<mosaic_0001>
module attributes {stable_mosaic.version = 11 : i64} {
  func.func @actor_continuous_kernel(%arg0: i32, %arg1: memref<8x32xf32, #tpu.memory_space<vmem>>, %arg2: memref<32x64xf32, #tpu.memory_space<vmem>>, %arg3: memref<1x64xf32, #tpu.memory_space<vmem>>, %arg4: memref<64x64xf32, #tpu.memory_space<vmem>>, %arg5: memref<1x64xf32, #tpu.memory_space<vmem>>, %arg6: memref<64x8xf32, #tpu.memory_space<vmem>>, %arg7: memref<1x8xf32, #tpu.memory_space<vmem>>, %arg8: memref<1x8xf32, #tpu.memory_space<vmem>>, %arg9: memref<8x8xf32, #tpu.memory_space<vmem>>, %arg10: memref<8x8xf32, #tpu.memory_space<vmem>>, %arg11: memref<8x8xf32, #tpu.memory_space<vmem>>, %arg12: memref<8x1xf32, #tpu.memory_space<vmem>>) attributes {dimension_semantics = [#tpu.dimension_semantics<parallel>], iteration_bounds = array<i64: 1>, scalar_prefetch = 0 : i64, scratch_operands = 0 : i64, tpu.core_type = #tpu.core_type<tc>, window_params = [{transform_indices = @transform_0, window_bounds = array<i64: 8, 32>}, {pipeline_mode = #tpu.pipeline_mode<synchronous>, transform_indices = @transform_1, window_bounds = array<i64: 32, 64>}, {pipeline_mode = #tpu.pipeline_mode<synchronous>, transform_indices = @transform_2, window_bounds = array<i64: 1, 64>}, {pipeline_mode = #tpu.pipeline_mode<synchronous>, transform_indices = @transform_3, window_bounds = array<i64: 64, 64>}, {pipeline_mode = #tpu.pipeline_mode<synchronous>, transform_indices = @transform_4, window_bounds = array<i64: 1, 64>}, {pipeline_mode = #tpu.pipeline_mode<synchronous>, transform_indices = @transform_5, window_bounds = array<i64: 64, 8>}, {pipeline_mode = #tpu.pipeline_mode<synchronous>, transform_indices = @transform_6, window_bounds = array<i64: 1, 8>}, {pipeline_mode = #tpu.pipeline_mode<synchronous>, transform_indices = @transform_7, window_bounds = array<i64: 1, 8>}, {transform_indices = @transform_8, window_bounds = array<i64: 8, 8>}, {transform_indices = @transform_9, window_bounds = array<i64: 8, 8>}, {transform_indices = @transform_10, window_bounds = array<i64: 8, 8>}, {transform_indices = @transform_11, window_bounds = array<i64: 8, 1>}]} {
    %c0 = arith.constant 0 : index
    %c0_0 = arith.constant 0 : index
    %0 = vector.load %arg1[%c0, %c0_0] : memref<8x32xf32, #tpu.memory_space<vmem>>, vector<8x32xf32>
    %c0_1 = arith.constant 0 : index
    %c0_2 = arith.constant 0 : index
    %1 = vector.load %arg2[%c0_1, %c0_2] : memref<32x64xf32, #tpu.memory_space<vmem>>, vector<32x64xf32>
    %cst = arith.constant dense<0.000000e+00> : vector<8x64xf32>
    %2 = tpu.matmul %0, %1, %cst {dimension_numbers = #tpu.dot_dimension_numbers<[1], [0], [0], [1], [0, 0, 1, 1], [], []>} : vector<8x32xf32>, vector<32x64xf32>, vector<8x64xf32> -> vector<8x64xf32>
    %c0_3 = arith.constant 0 : index
    %c0_4 = arith.constant 0 : index
    %3 = vector.load %arg3[%c0_3, %c0_4] : memref<1x64xf32, #tpu.memory_space<vmem>>, vector<1x64xf32>
    %4 = vector.broadcast %3 : vector<1x64xf32> to vector<8x64xf32>
    %5 = arith.addf %2, %4 : vector<8x64xf32>
    %6 = math.tanh %5 : vector<8x64xf32>
    %c0_5 = arith.constant 0 : index
    %c0_6 = arith.constant 0 : index
    %7 = vector.load %arg4[%c0_5, %c0_6] : memref<64x64xf32, #tpu.memory_space<vmem>>, vector<64x64xf32>
    %cst_7 = arith.constant dense<0.000000e+00> : vector<8x64xf32>
    %8 = tpu.matmul %6, %7, %cst_7 {dimension_numbers = #tpu.dot_dimension_numbers<[1], [0], [0], [1], [0, 0, 1, 1], [], []>} : vector<8x64xf32>, vector<64x64xf32>, vector<8x64xf32> -> vector<8x64xf32>
    %c0_8 = arith.constant 0 : index
    %c0_9 = arith.constant 0 : index
    %9 = vector.load %arg5[%c0_8, %c0_9] : memref<1x64xf32, #tpu.memory_space<vmem>>, vector<1x64xf32>
    %10 = vector.broadcast %9 : vector<1x64xf32> to vector<8x64xf32>
    %11 = arith.addf %8, %10 : vector<8x64xf32>
    %12 = math.tanh %11 : vector<8x64xf32>
    %c0_10 = arith.constant 0 : index
    %c0_11 = arith.constant 0 : index
    %13 = vector.load %arg6[%c0_10, %c0_11] : memref<64x8xf32, #tpu.memory_space<vmem>>, vector<64x8xf32>
    %cst_12 = arith.constant dense<0.000000e+00> : vector<8x8xf32>
    %14 = tpu.matmul %12, %13, %cst_12 {dimension_numbers = #tpu.dot_dimension_numbers<[1], [0], [0], [1], [0, 0, 1, 1], [], []>} : vector<8x64xf32>, vector<64x8xf32>, vector<8x8xf32> -> vector<8x8xf32>
    %c0_13 = arith.constant 0 : index
    %c0_14 = arith.constant 0 : index
    %15 = vector.load %arg7[%c0_13, %c0_14] : memref<1x8xf32, #tpu.memory_space<vmem>>, vector<1x8xf32>
    %16 = vector.broadcast %15 : vector<1x8xf32> to vector<8x8xf32>
    %17 = arith.addf %14, %16 : vector<8x8xf32>
    %c0_15 = arith.constant 0 : index
    %c0_16 = arith.constant 0 : index
    %18 = vector.load %arg8[%c0_15, %c0_16] : memref<1x8xf32, #tpu.memory_space<vmem>>, vector<1x8xf32>
    %19 = math.exp %18 : vector<1x8xf32>
    %c0_17 = arith.constant 0 : index
    %c0_18 = arith.constant 0 : index
    %20 = vector.load %arg9[%c0_17, %c0_18] : memref<8x8xf32, #tpu.memory_space<vmem>>, vector<8x8xf32>
    %c0_19 = arith.constant 0 : index
    %c0_20 = arith.constant 0 : index
    %21 = vector.load %arg10[%c0_19, %c0_20] : memref<8x8xf32, #tpu.memory_space<vmem>>, vector<8x8xf32>
    tpu.vector_store %arg10[%c0_19, %c0_20], %17 {strides = array<i32>} : memref<8x8xf32, #tpu.memory_space<vmem>>, vector<8x8xf32>,
    %22 = vector.broadcast %19 : vector<1x8xf32> to vector<8x8xf32>
    %23 = arith.mulf %22, %20 : vector<8x8xf32>
    %24 = arith.addf %17, %23 : vector<8x8xf32>
    %c0_21 = arith.constant 0 : index
    %c0_22 = arith.constant 0 : index
    %25 = vector.load %arg11[%c0_21, %c0_22] : memref<8x8xf32, #tpu.memory_space<vmem>>, vector<8x8xf32>
    tpu.vector_store %arg11[%c0_21, %c0_22], %24 {strides = array<i32>} : memref<8x8xf32, #tpu.memory_space<vmem>>, vector<8x8xf32>,
    %cst_23 = arith.constant dense<0.000000e+00> : vector<1xf32>
    %26 = vector.multi_reduction <add>, %18, %cst_23 [1] : vector<1x8xf32> to vector<1xf32>
    %27 = vector.shape_cast %26 : vector<1xf32> to vector<1x1xf32>
    %cst_24 = arith.constant 7.35150814 : f32
    %28 = vector.broadcast %cst_24 : f32 to vector<1x1xf32>
    %29 = arith.addf %27, %28 : vector<1x1xf32>
    %30 = arith.mulf %20, %20 : vector<8x8xf32>
    %cst_25 = arith.constant dense<0.000000e+00> : vector<8xf32>
    %31 = vector.multi_reduction <add>, %30, %cst_25 [1] : vector<8x8xf32> to vector<8xf32>
    %32 = vector.shape_cast %31 : vector<8xf32> to vector<8x1xf32>
    %cst_26 = arith.constant -5.000000e-01 : f32
    %33 = vector.broadcast %cst_26 : f32 to vector<8x1xf32>
    %34 = arith.mulf %33, %32 : vector<8x1xf32>
    %35 = vector.broadcast %29 : vector<1x1xf32> to vector<8x1xf32>
    %36 = arith.subf %34, %35 : vector<8x1xf32>
    %c0_27 = arith.constant 0 : index
    %c0_28 = arith.constant 0 : index
    %37 = vector.load %arg12[%c0_27, %c0_28] : memref<8x1xf32, #tpu.memory_space<vmem>>, vector<8x1xf32>
    tpu.vector_store %arg12[%c0_27, %c0_28], %36 {strides = array<i32>} : memref<8x1xf32, #tpu.memory_space<vmem>>, vector<8x1xf32>,
    return
  }
  func.func @transform_0(%arg0: i32) -> (i32, i32) {
    %c0_i32 = arith.constant 0 : i32
    %c0_i32_0 = arith.constant 0 : i32
    return %arg0, %c0_i32 : i32, i32
  }
  func.func @transform_1(%arg0: i32) -> (i32, i32) {
    %c0_i32 = arith.constant 0 : i32
    %c0_i32_0 = arith.constant 0 : i32
    %c0_i32_1 = arith.constant 0 : i32
    return %c0_i32, %c0_i32_0 : i32, i32
  }
  func.func @transform_2(%arg0: i32) -> (i32, i32) {
    %c0_i32 = arith.constant 0 : i32
    %c0_i32_0 = arith.constant 0 : i32
    %c0_i32_1 = arith.constant 0 : i32
    return %c0_i32, %c0_i32_0 : i32, i32
  }
  func.func @transform_3(%arg0: i32) -> (i32, i32) {
    %c0_i32 = arith.constant 0 : i32
    %c0_i32_0 = arith.constant 0 : i32
    %c0_i32_1 = arith.constant 0 : i32
    return %c0_i32, %c0_i32_0 : i32, i32
  }
  func.func @transform_4(%arg0: i32) -> (i32, i32) {
    %c0_i32 = arith.constant 0 : i32
    %c0_i32_0 = arith.constant 0 : i32
    %c0_i32_1 = arith.constant 0 : i32
    return %c0_i32, %c0_i32_0 : i32, i32
  }
  func.func @transform_5(%arg0: i32) -> (i32, i32) {
    %c0_i32 = arith.constant 0 : i32
    %c0_i32_0 = arith.constant 0 : i32
    %c0_i32_1 = arith.constant 0 : i32
    return %c0_i32, %c0_i32_0 : i32, i32
  }
  func.func @transform_6(%arg0: i32) -> (i32, i32) {
    %c0_i32 = arith.constant 0 : i32
    %c0_i32_0 = arith.constant 0 : i32
    %c0_i32_1 = arith.constant 0 : i32
    return %c0_i32, %c0_i32_0 : i32, i32
  }
  func.func @transform_7(%arg0: i32) -> (i32, i32) {
    %c0_i32 = arith.constant 0 : i32
    %c0_i32_0 = arith.constant 0 : i32
    %c0_i32_1 = arith.constant 0 : i32
    return %c0_i32, %c0_i32_0 : i32, i32
  }
  func.func @transform_8(%arg0: i32) -> (i32, i32) {
    %c0_i32 = arith.constant 0 : i32
    %c0_i32_0 = arith.constant 0 : i32
    return %arg0, %c0_i32 : i32, i32
  }
  func.func @transform_9(%arg0: i32) -> (i32, i32) {
    %c0_i32 = arith.constant 0 : i32
    %c0_i32_0 = arith.constant 0 : i32
    return %arg0, %c0_i32 : i32, i32
  }
  func.func @transform_10(%arg0: i32) -> (i32, i32) {
    %c0_i32 = arith.constant 0 : i32
    %c0_i32_0 = arith.constant 0 : i32
    return %arg0, %c0_i32 : i32, i32
  }
  func.func @transform_11(%arg0: i32) -> (i32, i32) {
    %c0_i32 = arith.constant 0 : i32
    %c0_i32_0 = arith.constant 0 : i32
    return %arg0, %c0_i32 : i32, i32
  }
}

</mosaic_0001>

<llo_original>
// kernel: tpu_custom_call.1
$region0: #{tpu_custom_call.1}
  #allocation0 [shape = 'u32[]', space=smem, size = 0x4, offset = 0x4, fixed_abs, tag = 'smem constant byte address 0x4 - core index']
  #allocation1 [shape = 'u32[72,128]{1,0:T(1,128)}', space=vmem, size = 0x9000, scoped, tag = 'internal scratch']
  %s0 = inlined_call_operand.vmem [shape: f32[8,32], index: 0, kind: input, shape index: {}]
  %s1 = inlined_call_operand.hbm [shape: f32[32,64], index: 1, kind: input, shape index: {}]
  %s2 = inlined_call_operand.vmem [shape: f32[1,64], index: 2, kind: input, shape index: {}]
  %s3 = inlined_call_operand.vmem [shape: f32[64,64], index: 3, kind: input, shape index: {}]
  %s4 = inlined_call_operand.vmem [shape: f32[1,64], index: 4, kind: input, shape index: {}]
  %s5 = inlined_call_operand.vmem [shape: f32[64,8], index: 5, kind: input, shape index: {}]
  %s6 = inlined_call_operand.vmem [shape: f32[1,8], index: 6, kind: input, shape index: {}]
  %s7 = inlined_call_operand.vmem [shape: f32[1,8], index: 7, kind: input, shape index: {}]
  %s8 = inlined_call_operand.hbm [shape: f32[8,8], index: 8, kind: input, shape index: {}]
  %s9 = inlined_call_operand.hbm [shape: f32[8,8], index: 9, kind: output, shape index: {0}]
  %s10 = inlined_call_operand.hbm [shape: f32[8,8], index: 10, kind: output, shape index: {1}]
  %s11 = inlined_call_operand.vmem [shape: f32[8,1], index: 11, kind: output, shape index: {2}]
  %12 = xla_tuple %s9, %s10, %s11
  %s13 = sld [smem:[#allocation0]]
  $region70: #{tpu_custom_call.1} parent=0
    _
  %s15 = ssub.s32 1, %s13
  %s16 = scalar_select 0, %s15, %s13
  $region1: #{tpu_custom_call.1} parent=0
    #allocation2 [shape = 'u8[16384]{0}', space=vmem, size = 0x4000, scoped, tag = 'input window, operand 1, single buffered']
    #allocation3 [shape = 's32[1]{0}', space=sflag, size = 0x4, scoped, tag = 'scoped memory for tpu_custom_call.1']
    #allocation4 [shape = 's32[1]{0}', space=sflag, size = 0x4, scoped, tag = 'scoped memory for tpu_custom_call.1']
    #allocation5 [shape = 'u8[4096]{0}', space=vmem, size = 0x1000, scoped, tag = 'input window, operand 8, single buffered']
    #allocation6 [shape = 's32[1]{0}', space=sflag, size = 0x4, scoped, tag = 'scoped memory for tpu_custom_call.1']
    #allocation7 [shape = 'u8[4096]{0}', space=vmem, size = 0x1000, scoped, tag = 'output window, operand 0, single buffered']
    #allocation8 [shape = 'u8[4096]{0}', space=vmem, size = 0x1000, scoped, tag = 'output window, operand 1, single buffered']
    #allocation9 [shape = 's32[1]{0}', space=sflag, size = 0x4, scoped, tag = 'scoped memory for tpu_custom_call.1']
    %17 = vsyncpa [#allocation3], 0
    %18 = vsyncpa [#allocation6], 0
    %19 = vsyncpa [#allocation4], 0
    %20 = vsyncpa [#allocation9], 0
    // Predicated region
    $region2: #{tpu_custom_call.1} parent=1 // pred_check
      _
    $region3: #{tpu_custom_call.1} parent=1 // pred_check_branch
      %22 = sbr.rel (0) target = $region5
    $region4: #{tpu_custom_call.1} parent=1 // pred_region
      _
    $region5: #{tpu_custom_call.1} parent=1 // pred_fallthru
      _
    // Predicated region
    $region6: #{tpu_custom_call.1} parent=1 // pred_check
      _
    $region7: #{tpu_custom_call.1} parent=1 // pred_check_branch
      %24 = sbr.rel (0) target = $region9
    $region8: #{tpu_custom_call.1} parent=1 // pred_region
      %26 = vsyncadd [#allocation3], 0
      %s27 = sshll.u32 %s1, 4
      %s28 = int_to_ptr.hbm [resolvable:$true] %s27
      %s29 = sshll.u32 [#allocation2], 4
      %s30 = int_to_ptr.vmem [resolvable:$true] %s29
      %35 = dma.hbm_to_vmem [thread:$0]  %s28, 512, %s30, [#allocation3], 128, 128, 8
    $region9: #{tpu_custom_call.1} parent=1 // pred_fallthru
      _
    // Predicated region
    $region10: #{tpu_custom_call.1} parent=1 // pred_check
      _
    $region11: #{tpu_custom_call.1} parent=1 // pred_check_branch
      %37 = sbr.rel (0) target = $region13
    $region12: #{tpu_custom_call.1} parent=1 // pred_region
      _
    $region13: #{tpu_custom_call.1} parent=1 // pred_fallthru
      _
    // Predicated region
    $region14: #{tpu_custom_call.1} parent=1 // pred_check
      _
    $region15: #{tpu_custom_call.1} parent=1 // pred_check_branch
      %39 = sbr.rel (0) target = $region17
    $region16: #{tpu_custom_call.1} parent=1 // pred_region
      _
    $region17: #{tpu_custom_call.1} parent=1 // pred_fallthru
      _
    // Predicated region
    $region18: #{tpu_custom_call.1} parent=1 // pred_check
      _
    $region19: #{tpu_custom_call.1} parent=1 // pred_check_branch
      %41 = sbr.rel (0) target = $region21
    $region20: #{tpu_custom_call.1} parent=1 // pred_region
      _
    $region21: #{tpu_custom_call.1} parent=1 // pred_fallthru
      _
    // Predicated region
    $region22: #{tpu_custom_call.1} parent=1 // pred_check
      _
    $region23: #{tpu_custom_call.1} parent=1 // pred_check_branch
      %43 = sbr.rel (0) target = $region25
    $region24: #{tpu_custom_call.1} parent=1 // pred_region
      _
    $region25: #{tpu_custom_call.1} parent=1 // pred_fallthru
      _
    // Predicated region
    $region26: #{tpu_custom_call.1} parent=1 // pred_check
      _
    $region27: #{tpu_custom_call.1} parent=1 // pred_check_branch
      %45 = sbr.rel (0) target = $region29
    $region28: #{tpu_custom_call.1} parent=1 // pred_region
      _
    $region29: #{tpu_custom_call.1} parent=1 // pred_fallthru
      _
    // Predicated region
    $region30: #{tpu_custom_call.1} parent=1 // pred_check
      _
    $region31: #{tpu_custom_call.1} parent=1 // pred_check_branch
      %47 = sbr.rel (0) target = $region33
    $region32: #{tpu_custom_call.1} parent=1 // pred_region
      _
    $region33: #{tpu_custom_call.1} parent=1 // pred_fallthru
      _
    // Predicated region
    $region34: #{tpu_custom_call.1} parent=1 // pred_check
      _
    $region35: #{tpu_custom_call.1} parent=1 // pred_check_branch
      %49 = sbr.rel (0) target = $region37
    $region36: #{tpu_custom_call.1} parent=1 // pred_region
      %51 = vsyncadd [#allocation6], 0
      %s53 = sshll.u32 %s8, 4
      %s54 = int_to_ptr.hbm [resolvable:$true] %s53
      %s55 = sshll.u32 [#allocation5], 4
      %s56 = int_to_ptr.vmem [resolvable:$true] %s55
      %58 = dma.hbm_to_vmem [thread:$0]  %s54, 128, %s56, [#allocation6]
    $region37: #{tpu_custom_call.1} parent=1 // pred_fallthru
      _
    // Predicated region
    $region38: #{tpu_custom_call.1} parent=1 // pred_check
      _
    $region39: #{tpu_custom_call.1} parent=1 // pred_check_branch
      %60 = sbr.rel (0) target = $region41
    $region40: #{tpu_custom_call.1} parent=1 // pred_region
      %62 = dma.done [#allocation3], 512
    $region41: #{tpu_custom_call.1} parent=1 // pred_fallthru
      _
    // Predicated region
    $region42: #{tpu_custom_call.1} parent=1 // pred_check
      _
    $region43: #{tpu_custom_call.1} parent=1 // pred_check_branch
      %64 = sbr.rel (0) target = $region45
    $region44: #{tpu_custom_call.1} parent=1 // pred_region
      %66 = dma.done [#allocation6], 128
    $region45: #{tpu_custom_call.1} parent=1 // pred_fallthru
      _
    %v67 = vld [vmem:[%s0] sm:$0xff]
    %v68 = vld [vmem:[#allocation2] sm:$0xff]
    %v69 = vld [vmem:[#allocation2 + $0x8] sm:$0xff]
    %v70 = vld [vmem:[#allocation2 + $0x10] sm:$0xff]
    %v71 = vld [vmem:[#allocation2 + $0x18] sm:$0xff]
    %v72 = vld [vmem:[%s2] sm:$0x1]
    %v74 = vperm.slane %v72, 0
    %vm76 = vcmask 261120
    %v78 = vsel %vm76, %v67, 0
    %80 = vmatpush.msra.mxu0 0.0
    %81 = vmatpush.msra.mxu0 0.0
    %82 = vmatpush.msra.mxu0 0.0
    %83 = vmatpush.msra.mxu0 0.0
    %84 = vmatpush.msra.mxu0 0.0
    %85 = vmatpush.msra.mxu0 0.0
    %86 = vmatpush.msra.mxu0 0.0
    %87 = vmatpush.msra.mxu0 0.0
    %88 = vmatpush.msra.mxu0 0.0
    %89 = vmatpush.msra.mxu0 0.0
    %90 = vmatpush.msra.mxu0 0.0
    %91 = vmatpush.msra.mxu0 0.0
    %92 = vmatpush.msra.mxu0 %v71
    %93 = vmatpush.msra.mxu0 %v70
    %94 = vmatpush.msra.mxu0 %v69
    %95 = vmatpush.msra.mxu0 %v68
    %96 = vmatmul.f32.gmra.mxu0 %v78
    %v97 = vpop.f32.mrf.mxu0
    %v98 = vadd.f32 %v74, %v97
    %99 = vdwg.mxu0
    %v100 = vtanh.pop %v98
    %v101 = vld [vmem:[%s3] sm:$0xff]
    %v102 = vld [vmem:[%s3 + $0x8] sm:$0xff]
    %v103 = vld [vmem:[%s3 + $0x10] sm:$0xff]
    %v104 = vld [vmem:[%s3 + $0x18] sm:$0xff]
    %v105 = vld [vmem:[%s3 + $0x20] sm:$0xff]
    %v106 = vld [vmem:[%s3 + $0x28] sm:$0xff]
    %v107 = vld [vmem:[%s3 + $0x30] sm:$0xff]
    %v108 = vld [vmem:[%s3 + $0x38] sm:$0xff]
    %v109 = vld [vmem:[%s4] sm:$0x1]
    %v111 = vperm.slane %v109, 0
    %vm113 = vcmask 523264
    %v115 = vsel %vm113, %v100, 0
    %117 = vmatpush.msra.mxu0 0.0
    %118 = vmatpush.msra.mxu0 0.0
    %119 = vmatpush.msra.mxu0 0.0
    %120 = vmatpush.msra.mxu0 0.0
    %121 = vmatpush.msra.mxu0 0.0
    %122 = vmatpush.msra.mxu0 0.0
    %123 = vmatpush.msra.mxu0 0.0
    %124 = vmatpush.msra.mxu0 0.0
    %125 = vmatpush.msra.mxu0 %v108
    %126 = vmatpush.msra.mxu0 %v107
    %127 = vmatpush.msra.mxu0 %v106
    %128 = vmatpush.msra.mxu0 %v105
    %129 = vmatpush.msra.mxu0 %v104
    %130 = vmatpush.msra.mxu0 %v103
    %131 = vmatpush.msra.mxu0 %v102
    %132 = vmatpush.msra.mxu0 %v101
    %133 = vmatmul.f32.gmra.mxu0 %v115
    %v134 = vpop.f32.mrf.mxu0
    %v135 = vadd.f32 %v111, %v134
    %136 = vdwg.mxu0
    %v137 = vtanh.pop %v135
    %v138 = vld [vmem:[%s5] sm:$0xff]
    %v139 = vld [vmem:[%s5 + $0x8] sm:$0xff]
    %v140 = vld [vmem:[%s5 + $0x10] sm:$0xff]
    %v141 = vld [vmem:[%s5 + $0x18] sm:$0xff]
    %v142 = vld [vmem:[%s5 + $0x20] sm:$0xff]
    %v143 = vld [vmem:[%s5 + $0x28] sm:$0xff]
    %v144 = vld [vmem:[%s5 + $0x30] sm:$0xff]
    %v145 = vld [vmem:[%s5 + $0x38] sm:$0xff]
    %v146 = vld [vmem:[%s6] sm:$0x1]
    %v148 = vperm.slane %v146, 0
    %v151 = vsel %vm113, %v137, 0
    %153 = vmatpush.msra.mxu0 0.0
    %154 = vmatpush.msra.mxu0 0.0
    %155 = vmatpush.msra.mxu0 0.0
    %156 = vmatpush.msra.mxu0 0.0
    %157 = vmatpush.msra.mxu0 0.0
    %158 = vmatpush.msra.mxu0 0.0
    %159 = vmatpush.msra.mxu0 0.0
    %160 = vmatpush.msra.mxu0 0.0
    %161 = vmatpush.msra.mxu0 %v145
    %162 = vmatpush.msra.mxu0 %v144
    %163 = vmatpush.msra.mxu0 %v143
    %164 = vmatpush.msra.mxu0 %v142
    %165 = vmatpush.msra.mxu0 %v141
    %166 = vmatpush.msra.mxu0 %v140
    %167 = vmatpush.msra.mxu0 %v139
    %168 = vmatpush.msra.mxu0 %v138
    %169 = vmatmul.f32.gmra.mxu0 %v151
    %v170 = vpop.f32.mrf.mxu0
    %v171 = vadd.f32 %v148, %v170
    %172 = vdwg.mxu0
    %v173 = vld [vmem:[%s7] sm:$0x1]
    %v174 = vmul.f32 %v173, 1.442695
    %v175 = vpow.pop %v174
    %v176 = vld [vmem:[#allocation5] sm:$0xff]
    %vm177 = vcmask 64512
    %178 = vst.msk [vmem:[#allocation7] sm:$0xff] %vm177, %v171
    %v180 = vperm.slane %v175, 0
    %v182 = vmul.f32 %v180, %v176
    %v183 = vadd.f32 %v171, %v182
    %184 = vst.msk [vmem:[#allocation8] sm:$0xff] %vm177, %v183
    %vm185 = vcmask 57344
    %v186 = vsel %vm185, %v173, 0.0
    %187 = vadd.xlane.f32.xlu0 %v186
    %v188 = vpop.xlane.xlu0 %187
    %v189 = vadd.f32 %v188, 7.351508
    %v190 = vmul.f32 %v176, %v176
    %v191 = vsel %vm177, %v190, 0.0
    %192 = vadd.xlane.f32.xlu0 %v191
    %v193 = vpop.xlane.xlu0 %192
    %v194 = vmul.f32 %v193, -0.5
    %v195 = vperm.slane %v189, 0
    %v196 = vsub.f32 %v194, %v195
    %vm197 = vcmask 7168
    %198 = vst.msk [vmem:[%s11] sm:$0xff] %vm197, %v196
    // Predicated region
    $region46: #{tpu_custom_call.1} parent=1 // pred_check
      _
    $region47: #{tpu_custom_call.1} parent=1 // pred_check_branch
      %200 = sbr.rel (0) target = $region49
    $region48: #{tpu_custom_call.1} parent=1 // pred_region
      %202 = vsyncadd [#allocation4], 0
      %s204 = sshll.u32 [#allocation7], 4
      %s205 = int_to_ptr.vmem [resolvable:$true] %s204
      %s206 = sshll.u32 %s9, 4
      %s207 = int_to_ptr.hbm [resolvable:$true] %s206
      %209 = dma.vmem_to_hbm [thread:$0]  %s205, 128, %s207, [#allocation4]
    $region49: #{tpu_custom_call.1} parent=1 // pred_fallthru
      _
    // Predicated region
    $region50: #{tpu_custom_call.1} parent=1 // pred_check
      _
    $region51: #{tpu_custom_call.1} parent=1 // pred_check_branch
      %211 = sbr.rel (0) target = $region53
    $region52: #{tpu_custom_call.1} parent=1 // pred_region
      %213 = vsyncadd [#allocation9], 0
      %s215 = sshll.u32 [#allocation8], 4
      %s216 = int_to_ptr.vmem [resolvable:$true] %s215
      %s217 = sshll.u32 %s10, 4
      %s218 = int_to_ptr.hbm [resolvable:$true] %s217
      %220 = dma.vmem_to_hbm [thread:$0]  %s216, 128, %s218, [#allocation9]
    $region53: #{tpu_custom_call.1} parent=1 // pred_fallthru
      _
    // Predicated region
    $region54: #{tpu_custom_call.1} parent=1 // pred_check
      _
    $region55: #{tpu_custom_call.1} parent=1 // pred_check_branch
      %222 = sbr.rel (0) target = $region57
    $region56: #{tpu_custom_call.1} parent=1 // pred_region
      _
    $region57: #{tpu_custom_call.1} parent=1 // pred_fallthru
      _
    // Predicated region
    $region58: #{tpu_custom_call.1} parent=1 // pred_check
      _
    $region59: #{tpu_custom_call.1} parent=1 // pred_check_branch
      %224 = sbr.rel (0) target = $region61
    $region60: #{tpu_custom_call.1} parent=1 // pred_region
      %226 = dma.done [#allocation4], 128
    $region61: #{tpu_custom_call.1} parent=1 // pred_fallthru
      _
    // Predicated region
    $region62: #{tpu_custom_call.1} parent=1 // pred_check
      _
    $region63: #{tpu_custom_call.1} parent=1 // pred_check_branch
      %228 = sbr.rel (0) target = $region65
    $region64: #{tpu_custom_call.1} parent=1 // pred_region
      %230 = dma.done [#allocation9], 128
    $region65: #{tpu_custom_call.1} parent=1 // pred_fallthru
      _
    // Predicated region
    $region66: #{tpu_custom_call.1} parent=1 // pred_check
      _
    $region67: #{tpu_custom_call.1} parent=1 // pred_check_branch
      %232 = sbr.rel (0) target = $region69
    $region68: #{tpu_custom_call.1} parent=1 // pred_region
      _
    $region69: #{tpu_custom_call.1} parent=1 // pred_fallthru
      _
    %233 = vsyncpa [#allocation3], 1
    %234 = vsyncpa [#allocation6], 1
    %235 = vsyncpa [#allocation4], 1
    %236 = vsyncpa [#allocation9], 1

</llo_original>
